<compile_context>
chip_gen: v5e
topology: v5e:2x2
jax: 0.10.0
libtpu: 0.0.40
codegen_flags: <defaults>
</compile_context>

<pallas_src>
import functools

import jax
import jax.numpy as jnp
from jax.experimental import pallas as pl
from jax.experimental.pallas import tpu as pltpu


_MODES = ('None', 'PN', 'PN-SI', 'PN-SCS')

# Scoped-VMEM budget: >= default on v5e (16 MiB), == default on v6e/v7x
# (32 MiB), comfortably below physical on every generation (128/128/64 MiB).
_VMEM_LIMIT = 32 * 1024 * 1024

# Whole-array (padded, f32-equivalent) size below which we use the fused
# single-block kernel.
_FUSED_BYTES = 2 * 1024 * 1024

# Row-tile target for the streaming path: ~4 MiB (f32) per (tm, Dp) tile keeps
# the double-buffered in + out around 16 MiB (inside the 32 MiB scoped budget)
# and is past the knee of the HBM-roofline-vs-tile-size curve.
_TILE_BYTES = 4 * 1024 * 1024


def _round_up(v, m):
    return ((v + m - 1) // m) * m


# ---------------- fused single-block kernels (whole array in VMEM) ---------- #

def _fused_pn_kernel(x_ref, o_ref, *, scale, n, pad_rows):
    x = x_ref[...].astype(jnp.float32)
    col_mean = jnp.sum(x, axis=0, keepdims=True) * (1.0 / n)        # (1, Dp)
    xc = x - col_mean
    mu_sq = jnp.sum(col_mean * col_mean)
    # Padded rows are zero, so after centering each contributes ||mu||^2.
    mean_sq = (jnp.sum(xc * xc) - pad_rows * mu_sq) * (1.0 / n)
    inv = scale * jax.lax.rsqrt(1e-6 + mean_sq)                      # EUP rsqrt
    o_ref[...] = (xc * inv).astype(o_ref.dtype)


def _fused_pn_si_kernel(x_ref, o_ref, *, scale, n, pad_rows):
    del pad_rows  # padded rows produce junk that is sliced off by the wrapper
    x = x_ref[...].astype(jnp.float32)
    col_mean = jnp.sum(x, axis=0, keepdims=True) * (1.0 / n)
    xc = x - col_mean
    row_sq = jnp.sum(xc * xc, axis=1, keepdims=True)                 # (Np, 1)
    inv = scale * jax.lax.rsqrt(1e-6 + row_sq)
    o_ref[...] = (xc * inv).astype(o_ref.dtype)


def _fused_pn_scs_kernel(x_ref, o_ref, *, scale, n, pad_rows):
    del pad_rows
    x = x_ref[...].astype(jnp.float32)
    col_mean = jnp.sum(x, axis=0, keepdims=True) * (1.0 / n)
    row_sq = jnp.sum(x * x, axis=1, keepdims=True)
    inv = scale * jax.lax.rsqrt(1e-6 + row_sq)
    # PyTorch ordering: scale it first, then subtract the original column mean.
    o_ref[...] = (x * inv - col_mean).astype(o_ref.dtype)


_FUSED_KERNELS = {
    'PN': _fused_pn_kernel,
    'PN-SI': _fused_pn_si_kernel,
    'PN-SCS': _fused_pn_scs_kernel,
}


# ------------------------- pass 1: streaming stats ------------------------- #

def _stats_kernel(x_ref, colsum_ref, sumsq_ref):
    @pl.when(pl.program_id(0) == 0)
    def _():
        colsum_ref[...] = jnp.zeros_like(colsum_ref)
        sumsq_ref[...] = jnp.zeros_like(sumsq_ref)

    x = x_ref[...].astype(jnp.float32)
    colsum_ref[...] += jnp.sum(x, axis=0, keepdims=True)             # (1, Dp)
    sumsq_ref[...] += jnp.sum(x * x).reshape(1, 1)                   # (1, 1)


# ----------------------- pass 2: apply normalization ----------------------- #

def _pn_apply_kernel(x_ref, colsum_ref, sumsq_ref, o_ref, *, scale, n):
    # mode == 'PN': center per-column, divide by mean row-norm (global scalar).
    x = x_ref[...].astype(jnp.float32)
    col_mean = colsum_ref[...] * (1.0 / n)                           # (1, Dp)
    # mean_i ||x_i - mu||^2 = mean_i ||x_i||^2 - ||mu||^2  (zero-padded rows
    # contribute nothing to sum ||x_i||^2, so this is exact for padded N).
    mu_sq = jnp.sum(col_mean * col_mean, axis=1, keepdims=True)      # (1, 1)
    mean_sq = sumsq_ref[...] * (1.0 / n) - mu_sq                     # (1, 1)
    inv = scale * jax.lax.rsqrt(1e-6 + mean_sq)                      # EUP rsqrt
    o_ref[...] = ((x - col_mean) * inv).astype(o_ref.dtype)


def _pn_si_apply_kernel(x_ref, colsum_ref, sumsq_ref, o_ref, *, scale, n):
    # mode == 'PN-SI': center per-column, divide by per-row norm.
    del sumsq_ref
    x = x_ref[...].astype(jnp.float32)
    col_mean = colsum_ref[...] * (1.0 / n)
    xc = x - col_mean
    row_sq = jnp.sum(xc * xc, axis=1, keepdims=True)                 # (tm, 1)
    inv = scale * jax.lax.rsqrt(1e-6 + row_sq)
    o_ref[...] = (xc * inv).astype(o_ref.dtype)


def _pn_scs_apply_kernel(x_ref, colsum_ref, sumsq_ref, o_ref, *, scale, n):
    # mode == 'PN-SCS': divide by per-row norm of the *original* x, then
    # subtract the column mean of the original x (matches PyTorch ordering).
    del sumsq_ref
    x = x_ref[...].astype(jnp.float32)
    col_mean = colsum_ref[...] * (1.0 / n)
    row_sq = jnp.sum(x * x, axis=1, keepdims=True)
    inv = scale * jax.lax.rsqrt(1e-6 + row_sq)
    o_ref[...] = (x * inv - col_mean).astype(o_ref.dtype)


_APPLY_KERNELS = {
    'PN': _pn_apply_kernel,
    'PN-SI': _pn_si_apply_kernel,
    'PN-SCS': _pn_scs_apply_kernel,
}


# ------------------------------- wrapper ----------------------------------- #

@functools.partial(jax.jit,
                   static_argnames=('mode', 'scale', 'row_tile', 'max_fused_bytes'))
def _pairnorm_impl(x, *, mode, scale, row_tile, max_fused_bytes):
    N, D = x.shape
    itemsize = jnp.dtype(x.dtype).itemsize

    # Lane-dense feature axis (multiple of 128) -> unmasked vector stores.
    d_pad = _round_up(max(D, 128), 128)

    # ---------------------- fused single-block path ------------------------ #
    if _round_up(N, 8) * d_pad * 4 <= max_fused_bytes:
        n_pad = _round_up(N, 8)
        x_p = x
        if (n_pad, d_pad) != (N, D):
            x_p = jnp.pad(x, ((0, n_pad - N), (0, d_pad - D)))
        kernel = functools.partial(_FUSED_KERNELS[mode], scale=float(scale),
                                   n=float(N), pad_rows=float(n_pad - N))
        out_p = pl.pallas_call(
            kernel,
            out_shape=jax.ShapeDtypeStruct((n_pad, d_pad), x.dtype),
            grid=(1,),
            in_specs=[pl.BlockSpec((n_pad, d_pad), lambda i: (0, 0))],
            out_specs=pl.BlockSpec((n_pad, d_pad), lambda i: (0, 0)),
            compiler_params=pltpu.CompilerParams(
                dimension_semantics=("arbitrary",),
                vmem_limit_bytes=_VMEM_LIMIT),
            cost_estimate=pl.CostEstimate(
                flops=8 * n_pad * d_pad, transcendentals=n_pad,
                bytes_accessed=2 * n_pad * d_pad * itemsize),
        )(x_p)
        if (n_pad, d_pad) != (N, D):
            out_p = out_p[:N, :D]
        return out_p

    # ------------------------ streaming two-pass path ---------------------- #
    # Row tile: ~4 MiB f32-equivalent per (tm, d_pad) tile.
    tm = _TILE_BYTES // (d_pad * 4)
    if row_tile is not None:
        tm = int(row_tile)
    tm = max(8, (tm // 8) * 8)
    tm = min(tm, _round_up(N, 8))
    n_pad = _round_up(N, tm)
    grid = (n_pad // tm,)

    x_p = x
    if (n_pad, d_pad) != (N, D):
        # Zero padding is exact for column sums / squared norms; padded output
        # rows/cols are sliced off below.
        x_p = jnp.pad(x, ((0, n_pad - N), (0, d_pad - D)))

    x_spec = pl.BlockSpec((tm, d_pad), lambda i: (i, 0))
    colsum_spec = pl.BlockSpec((1, d_pad), lambda i: (0, 0))
    sumsq_spec = pl.BlockSpec((1, 1), lambda i: (0, 0))

    # pass 1: column sums + sum of squared row norms (resident accumulators).
    colsum, sumsq = pl.pallas_call(
        _stats_kernel,
        out_shape=(jax.ShapeDtypeStruct((1, d_pad), jnp.float32),
                   jax.ShapeDtypeStruct((1, 1), jnp.float32)),
        grid=grid,
        in_specs=[x_spec],
        out_specs=(colsum_spec, sumsq_spec),
        compiler_params=pltpu.CompilerParams(
            dimension_semantics=("arbitrary",),
            vmem_limit_bytes=_VMEM_LIMIT),
        cost_estimate=pl.CostEstimate(
            flops=3 * n_pad * d_pad, transcendentals=0,
            bytes_accessed=n_pad * d_pad * itemsize),
    )(x_p)

    # pass 2: normalization (row tiles independent -> megacore parallel).
    kernel = functools.partial(_APPLY_KERNELS[mode], scale=float(scale),
                               n=float(N))
    out_p = pl.pallas_call(
        kernel,
        out_shape=jax.ShapeDtypeStruct((n_pad, d_pad), x.dtype),
        grid=grid,
        in_specs=[x_spec, colsum_spec, sumsq_spec],
        out_specs=x_spec,
        compiler_params=pltpu.CompilerParams(
            dimension_semantics=("parallel",),
            vmem_limit_bytes=_VMEM_LIMIT),
        cost_estimate=pl.CostEstimate(
            flops=6 * n_pad * d_pad, transcendentals=n_pad,
            bytes_accessed=2 * n_pad * d_pad * itemsize),
    )(x_p, colsum, sumsq)

    if (n_pad, d_pad) != (N, D):
        out_p = out_p[:N, :D]
    return out_p


def pairnorm(x, mode='PN', scale=1.0, *, row_tile=None,
             max_fused_bytes=_FUSED_BYTES):
    assert mode in _MODES
    if mode == 'None':
        return x
    return _pairnorm_impl(x, mode=mode, scale=float(scale),
                          row_tile=row_tile,
                          max_fused_bytes=int(max_fused_bytes))


# ------------------------------ reference ---------------------------------- #

def pairnorm_ref(x, mode='PN', scale=1.0):
    if mode == 'None':
        return x
    col_mean = x.mean(axis=0)
    if mode == 'PN':
        xc = x - col_mean
        rownorm_mean = jnp.sqrt(1e-6 + (xc ** 2).sum(axis=1).mean())
        return scale * xc / rownorm_mean
    if mode == 'PN-SI':
        xc = x - col_mean
        rownorm = jnp.sqrt(1e-6 + (xc ** 2).sum(axis=1, keepdims=True))
        return scale * xc / rownorm
    if mode == 'PN-SCS':
        rownorm = jnp.sqrt(1e-6 + (x ** 2).sum(axis=1, keepdims=True))
        return scale * x / rownorm - col_mean


# -------------------------------- test ------------------------------------- #

if __name__ == "__main__":
    key = jax.random.PRNGKey(0)
    ok = True
    # (128, 64): aligned case; (100, 48): exercises row/lane padding path.
    for (N, D) in [(128, 64), (100, 48)]:
        k, key = jax.random.split(key)
        x = jax.random.normal(k, (N, D), dtype=jnp.float32) + 0.5
        for mode in ['None', 'PN', 'PN-SI', 'PN-SCS']:
            ref = pairnorm_ref(x, mode=mode, scale=1.0)
            # {}                    -> fused single-block path
            # forced two-pass path  -> streaming stats + apply with a 32-row tile
            for kwargs in ({}, {'max_fused_bytes': 0, 'row_tile': 32}):
                out = pairnorm(x, mode=mode, scale=1.0, **kwargs)
                jax.block_until_ready(out)
                if not jnp.allclose(out, ref, atol=1e-5, rtol=1e-5):
                    ok = False
                    print("MISMATCH mode=%s shape=(%d,%d) kwargs=%s max_err=%.3e"
                          % (mode, N, D, kwargs,
                             float(jnp.max(jnp.abs(out - ref)))))
    if ok:
        print("KERNEL_OK")
</pallas_src>

<mosaic_0001>
module attributes {stable_mosaic.version = 11 : i64} {
  func.func @_fused_pn_kernel(%arg0: i32, %arg1: memref<128x128xf32, #tpu.memory_space<vmem>>, %arg2: memref<128x128xf32, #tpu.memory_space<vmem>>) attributes {dimension_semantics = [#tpu.dimension_semantics<arbitrary>], iteration_bounds = array<i64: 1>, scalar_prefetch = 0 : i64, scratch_operands = 0 : i64, tpu.core_type = #tpu.core_type<tc>, window_params = [{pipeline_mode = #tpu.pipeline_mode<synchronous>, transform_indices = @transform_0, window_bounds = array<i64: 128, 128>}, {pipeline_mode = #tpu.pipeline_mode<synchronous>, transform_indices = @transform_1, window_bounds = array<i64: 128, 128>}]} {
    %c0 = arith.constant 0 : index
    %c0_0 = arith.constant 0 : index
    %0 = vector.load %arg1[%c0, %c0_0] : memref<128x128xf32, #tpu.memory_space<vmem>>, vector<128x128xf32>
    %cst = arith.constant dense<0.000000e+00> : vector<128xf32>
    %1 = vector.multi_reduction <add>, %0, %cst [0] : vector<128x128xf32> to vector<128xf32>
    %2 = vector.shape_cast %1 : vector<128xf32> to vector<1x128xf32>
    %cst_1 = arith.constant 7.812500e-03 : f32
    %3 = vector.broadcast %cst_1 : f32 to vector<1x128xf32>
    %4 = arith.mulf %2, %3 : vector<1x128xf32>
    %5 = vector.broadcast %4 : vector<1x128xf32> to vector<128x128xf32>
    %6 = arith.subf %0, %5 : vector<128x128xf32>
    %7 = arith.mulf %4, %4 : vector<1x128xf32>
    %8 = vector.shape_cast %7 : vector<1x128xf32> to vector<1x1x128xf32>
    %cst_2 = arith.constant dense<0.000000e+00> : vector<1xf32>
    %9 = vector.multi_reduction <add>, %8, %cst_2 [1, 2] : vector<1x1x128xf32> to vector<1xf32>
    %10 = vector.shape_cast %9 : vector<1xf32> to vector<1x1x1xf32>
    %11 = vector.extract %10[0, 0, 0] : f32 from vector<1x1x1xf32>
    %12 = arith.mulf %6, %6 : vector<128x128xf32>
    %13 = vector.shape_cast %12 : vector<128x128xf32> to vector<1x128x128xf32>
    %cst_3 = arith.constant dense<0.000000e+00> : vector<1xf32>
    %14 = vector.multi_reduction <add>, %13, %cst_3 [1, 2] : vector<1x128x128xf32> to vector<1xf32>
    %15 = vector.shape_cast %14 : vector<1xf32> to vector<1x1x1xf32>
    %16 = vector.extract %15[0, 0, 0] : f32 from vector<1x1x1xf32>
    %cst_4 = arith.constant 0.000000e+00 : f32
    %17 = arith.mulf %cst_4, %11 : f32
    %18 = arith.subf %16, %17 : f32
    %cst_5 = arith.constant 7.812500e-03 : f32
    %19 = arith.mulf %18, %cst_5 : f32
    %cst_6 = arith.constant 9.99999997E-7 : f32
    %20 = arith.addf %cst_6, %19 : f32
    %21 = math.rsqrt %20 : f32
    %cst_7 = arith.constant 1.000000e+00 : f32
    %22 = arith.mulf %cst_7, %21 : f32
    %23 = vector.broadcast %22 : f32 to vector<128x128xf32>
    %24 = arith.mulf %6, %23 : vector<128x128xf32>
    %c0_8 = arith.constant 0 : index
    %c0_9 = arith.constant 0 : index
    %25 = vector.load %arg2[%c0_8, %c0_9] : memref<128x128xf32, #tpu.memory_space<vmem>>, vector<128x128xf32>
    tpu.vector_store %arg2[%c0_8, %c0_9], %24 {strides = array<i32>} : memref<128x128xf32, #tpu.memory_space<vmem>>, vector<128x128xf32>,
    return
  }
  func.func @transform_0(%arg0: i32) -> (i32, i32) {
    %c0_i32 = arith.constant 0 : i32
    %c0_i32_0 = arith.constant 0 : i32
    %c0_i32_1 = arith.constant 0 : i32
    return %c0_i32, %c0_i32_0 : i32, i32
  }
  func.func @transform_1(%arg0: i32) -> (i32, i32) {
    %c0_i32 = arith.constant 0 : i32
    %c0_i32_0 = arith.constant 0 : i32
    %c0_i32_1 = arith.constant 0 : i32
    return %c0_i32, %c0_i32_0 : i32, i32
  }
}

</mosaic_0001>

<llo_original>
// kernel: _pairnorm_impl.1
$region0: #{_pairnorm_impl.1}
  #allocation0 [shape = 'u32[]', space=smem, size = 0x4, offset = 0x4, fixed_abs, tag = 'smem constant byte address 0x4 - core index']
  #allocation1 [shape = 'u32[72,128]{1,0:T(1,128)}', space=vmem, size = 0x9000, scoped, tag = 'internal scratch']
  %s0 = inlined_call_operand.vmem [shape: f32[128,128], index: 0, kind: input, shape index: {}]
  %s1 = inlined_call_operand.vmem [shape: f32[128,128], index: 1, kind: output, shape index: {}]
  %s2 = sld [smem:[#allocation0]]
  $region14: #{_pairnorm_impl.1} parent=0
    _
  %s4 = ssub.s32 1, %s2
  %s5 = scalar_select 0, %s4, %s2
  // Predicated region
  $region2: #{_pairnorm_impl.1} parent=0 // pred_check
    _
  $region3: #{_pairnorm_impl.1} parent=0 // pred_check_branch
    %7 = sbr.rel (0) target = $region5
  $region4: #{_pairnorm_impl.1} parent=0 // pred_region
    _
  $region5: #{_pairnorm_impl.1} parent=0 // pred_fallthru
    _
  %v8 = vld [vmem:[%s0] sm:$0xff]
  %v9 = vld [vmem:[%s0 + $0x8] sm:$0xff]
  %v10 = vld [vmem:[%s0 + $0x10] sm:$0xff]
  %v11 = vld [vmem:[%s0 + $0x18] sm:$0xff]
  %v12 = vld [vmem:[%s0 + $0x20] sm:$0xff]
  %v13 = vld [vmem:[%s0 + $0x28] sm:$0xff]
  %v14 = vld [vmem:[%s0 + $0x30] sm:$0xff]
  %v15 = vld [vmem:[%s0 + $0x38] sm:$0xff]
  %v16 = vld [vmem:[%s0 + $0x40] sm:$0xff]
  %v17 = vld [vmem:[%s0 + $0x48] sm:$0xff]
  %v18 = vld [vmem:[%s0 + $0x50] sm:$0xff]
  %v19 = vld [vmem:[%s0 + $0x58] sm:$0xff]
  %v20 = vld [vmem:[%s0 + $0x60] sm:$0xff]
  %v21 = vld [vmem:[%s0 + $0x68] sm:$0xff]
  %v22 = vld [vmem:[%s0 + $0x70] sm:$0xff]
  %v23 = vld [vmem:[%s0 + $0x78] sm:$0xff]
  %v24 = vadd.f32 %v8, %v9
  %v25 = vadd.f32 %v24, %v10
  %v26 = vadd.f32 %v25, %v11
  %v27 = vadd.f32 %v26, %v12
  %v28 = vadd.f32 %v27, %v13
  %v29 = vadd.f32 %v28, %v14
  %v30 = vadd.f32 %v29, %v15
  %v31 = vadd.f32 %v30, %v16
  %v32 = vadd.f32 %v31, %v17
  %v33 = vadd.f32 %v32, %v18
  %v34 = vadd.f32 %v33, %v19
  %v35 = vadd.f32 %v34, %v20
  %v36 = vadd.f32 %v35, %v21
  %v37 = vadd.f32 %v36, %v22
  %v38 = vadd.f32 %v37, %v23
  %v39 = vrot.slane %v38, 4
  %v40 = vadd.f32 %v38, %v39
  %v41 = vrot.slane %v40, 2
  %v42 = vadd.f32 %v40, %v41
  %v43 = vrot.slane %v42, 1
  %v44 = vadd.f32 %v42, %v43
  %v45 = vmul.f32 %v44, 0.0078125
  %v46 = vsub.f32 %v8, %v45
  %v47 = vsub.f32 %v9, %v45
  %v48 = vsub.f32 %v10, %v45
  %v49 = vsub.f32 %v11, %v45
  %v50 = vsub.f32 %v12, %v45
  %v51 = vsub.f32 %v13, %v45
  %v52 = vsub.f32 %v14, %v45
  %v53 = vsub.f32 %v15, %v45
  %v54 = vsub.f32 %v16, %v45
  %v55 = vsub.f32 %v17, %v45
  %v56 = vsub.f32 %v18, %v45
  %v57 = vsub.f32 %v19, %v45
  %v58 = vsub.f32 %v20, %v45
  %v59 = vsub.f32 %v21, %v45
  %v60 = vsub.f32 %v22, %v45
  %v61 = vsub.f32 %v23, %v45
  %v62 = vmul.f32 %v45, %v45
  %vm63 = vcmask 1040384
  %v64 = vsel %vm63, %v62, 0.0
  %65 = vadd.xlane.f32.xlu0 %v64
  %v66 = vpop.xlane.xlu0 %65
  %v67 = vrot.slane %v66, 4
  %v68 = vadd.f32 %v66, %v67
  %v69 = vrot.slane %v68, 2
  %v70 = vadd.f32 %v68, %v69
  %v71 = vrot.slane %v70, 1
  %v72 = vadd.f32 %v70, %v71
  %s73 = vtos %v72
  %v74 = vmul.f32 %v46, %v46
  %v75 = vmul.f32 %v47, %v47
  %v76 = vmul.f32 %v48, %v48
  %v77 = vmul.f32 %v49, %v49
  %v78 = vmul.f32 %v50, %v50
  %v79 = vmul.f32 %v51, %v51
  %v80 = vmul.f32 %v52, %v52
  %v81 = vmul.f32 %v53, %v53
  %v82 = vmul.f32 %v54, %v54
  %v83 = vmul.f32 %v55, %v55
  %v84 = vmul.f32 %v56, %v56
  %v85 = vmul.f32 %v57, %v57
  %v86 = vmul.f32 %v58, %v58
  %v87 = vmul.f32 %v59, %v59
  %v88 = vmul.f32 %v60, %v60
  %v89 = vmul.f32 %v61, %v61
  %v90 = vadd.f32 %v74, %v75
  %v91 = vadd.f32 %v90, %v76
  %v92 = vadd.f32 %v91, %v77
  %v93 = vadd.f32 %v92, %v78
  %v94 = vadd.f32 %v93, %v79
  %v95 = vadd.f32 %v94, %v80
  %v96 = vadd.f32 %v95, %v81
  %v97 = vadd.f32 %v96, %v82
  %v98 = vadd.f32 %v97, %v83
  %v99 = vadd.f32 %v98, %v84
  %v100 = vadd.f32 %v99, %v85
  %v101 = vadd.f32 %v100, %v86
  %v102 = vadd.f32 %v101, %v87
  %v103 = vadd.f32 %v102, %v88
  %v104 = vadd.f32 %v103, %v89
  %105 = vadd.xlane.f32.xlu0 %v104
  %v106 = vpop.xlane.xlu0 %105
  %v107 = vrot.slane %v106, 4
  %v108 = vadd.f32 %v106, %v107
  %v109 = vrot.slane %v108, 2
  %v110 = vadd.f32 %v108, %v109
  %v111 = vrot.slane %v110, 1
  %v112 = vadd.f32 %v110, %v111
  %s113 = vtos %v112
  %s114 = smul.f32 %s73, 0.0
  %s115 = ssub.f32 %s113, %s114
  %s116 = smul.f32 %s115, 0.0078125
  %s117 = sadd.f32 %s116, 1e-06
  %v118 = vstv %s117
  %v119 = vrsqrt.pop %v118
  %v120 = vmul.f32 %v119, %v118
  %v121 = vmul.f32 %v120, %v119
  %v122 = vmul.f32 0.5, %v121
  %v123 = vsub.f32 1.5, %v122
  %v124 = vmul.f32 %v119, %v123
  %vm125 = vweird.f32 %v118
  %vm126 = vweird.f32 %v119
  %vm127 = vmor %vm125, %vm126
  %v128 = vsel %vm127, %v119, %v124
  %s129 = vtos %v128
  %v130 = vstv %s129
  %v131 = vmul.f32 %v46, %v130
  %v132 = vmul.f32 %v47, %v130
  %v133 = vmul.f32 %v48, %v130
  %v134 = vmul.f32 %v49, %v130
  %v135 = vmul.f32 %v50, %v130
  %v136 = vmul.f32 %v51, %v130
  %v137 = vmul.f32 %v52, %v130
  %v138 = vmul.f32 %v53, %v130
  %v139 = vmul.f32 %v54, %v130
  %v140 = vmul.f32 %v55, %v130
  %v141 = vmul.f32 %v56, %v130
  %v142 = vmul.f32 %v57, %v130
  %v143 = vmul.f32 %v58, %v130
  %v144 = vmul.f32 %v59, %v130
  %v145 = vmul.f32 %v60, %v130
  %v146 = vmul.f32 %v61, %v130
  %147 = vst [vmem:[%s1] sm:$0xff] %v131
  %148 = vst [vmem:[%s1 + $0x8] sm:$0xff] %v132
  %149 = vst [vmem:[%s1 + $0x10] sm:$0xff] %v133
  %150 = vst [vmem:[%s1 + $0x18] sm:$0xff] %v134
  %151 = vst [vmem:[%s1 + $0x20] sm:$0xff] %v135
  %152 = vst [vmem:[%s1 + $0x28] sm:$0xff] %v136
  %153 = vst [vmem:[%s1 + $0x30] sm:$0xff] %v137
  %154 = vst [vmem:[%s1 + $0x38] sm:$0xff] %v138
  %155 = vst [vmem:[%s1 + $0x40] sm:$0xff] %v139
  %156 = vst [vmem:[%s1 + $0x48] sm:$0xff] %v140
  %157 = vst [vmem:[%s1 + $0x50] sm:$0xff] %v141
  %158 = vst [vmem:[%s1 + $0x58] sm:$0xff] %v142
  %159 = vst [vmem:[%s1 + $0x60] sm:$0xff] %v143
  %160 = vst [vmem:[%s1 + $0x68] sm:$0xff] %v144
  %161 = vst [vmem:[%s1 + $0x70] sm:$0xff] %v145
  %162 = vst [vmem:[%s1 + $0x78] sm:$0xff] %v146
  // Predicated region
  $region6: #{_pairnorm_impl.1} parent=0 // pred_check
    _
  $region7: #{_pairnorm_impl.1} parent=0 // pred_check_branch
    %164 = sbr.rel (0) target = $region9
  $region8: #{_pairnorm_impl.1} parent=0 // pred_region
    _
  $region9: #{_pairnorm_impl.1} parent=0 // pred_fallthru
    _
  // Predicated region
  $region10: #{_pairnorm_impl.1} parent=0 // pred_check
    _
  $region11: #{_pairnorm_impl.1} parent=0 // pred_check_branch
    %166 = sbr.rel (0) target = $region13
  $region12: #{_pairnorm_impl.1} parent=0 // pred_region
    _
  $region13: #{_pairnorm_impl.1} parent=0 // pred_fallthru
    _

</llo_original>
